<compile_context>
chip_gen: v6e
topology: v6e:2x2x1
jax: 0.10.0
libtpu: 0.0.40
codegen_flags: <defaults>
</compile_context>

<pallas_src>
import functools

import jax
import jax.numpy as jnp
from jax.experimental import pallas as pl
from jax.experimental.pallas import tpu as pltpu


def _fused_gn_kernel(*refs, num_levels, eps):
    # refs = (x_ref_0..x_ref_{L-1}, o_ref_0..o_ref_{L-1}).  Each kernel view
    # is the full (G_blk, C/G * T_i) slab for ONE batch element (batch axis
    # squeezed by the BlockSpec).  Static Python loop over levels.
    x_refs = refs[:num_levels]
    o_refs = refs[num_levels:]
    for x_ref, o_ref in zip(x_refs, o_refs):
        x = x_ref[...].astype(jnp.float32)                    # single load
        inv_n = 1.0 / x.shape[-1]                             # true count (no padding)
        s = jnp.sum(x, axis=-1, keepdims=True)                # per-group sum
        sq = jnp.sum(x * x, axis=-1, keepdims=True)           # per-group sum of squares
        mean = s * inv_n
        var = jnp.maximum(sq * inv_n - mean * mean, 0.0)      # biased var (PyTorch GN)
        scale = jax.lax.rsqrt(var + eps)
        o_ref[...] = ((x - mean) * scale).astype(o_ref.dtype)


def _vmem_cap_bytes():
    # Generation-aware VMEM capacity (v5e/v6e: 128 MiB, v7x: 64 MiB per TC).
    try:
        info = pltpu.get_tpu_info()
        cap = getattr(info, "vmem_capacity_bytes", None)
        if cap:
            return int(cap)
    except Exception:
        pass
    return 64 << 20  # conservative fallback (v7x per-TC VMEM)


def fused_group_norm_pallas(xs, num_groups, eps=1e-5):
    """GroupNorm(affine=False) over a list of (B, C, T) features, one fused kernel."""
    assert len(xs) > 0
    b, c, _ = xs[0].shape
    dtype = xs[0].dtype
    for x in xs:
        assert x.ndim == 3 and x.shape[0] == b and x.shape[1] == c
        assert x.dtype == dtype
    assert c % num_groups == 0
    cg = c // num_groups

    # Free, contiguous (row-major) reshape: (B, C, T) -> (B, G, cg*T).
    xg = [x.reshape(b, num_groups, cg * x.shape[2]) for x in xs]
    lens = [xi.shape[2] for xi in xg]

    # Optional group split so v7x still gets a >=2-way parallel grid when B==1
    # (only legal if the per-step group block stays 8-sublane aligned).
    gsplit = 1
    if b == 1:
        for cand in (2, 4):
            if num_groups % cand == 0 and (num_groups // cand) % 8 == 0:
                gsplit = cand
                break
    g_blk = num_groups // gsplit

    in_specs = [
        pl.BlockSpec((None, g_blk, n), lambda i, g: (i, g, 0)) for n in lens
    ]
    out_specs = [
        pl.BlockSpec((None, g_blk, n), lambda i, g: (i, g, 0)) for n in lens
    ]
    out_shape = tuple(jax.ShapeDtypeStruct(xi.shape, dtype) for xi in xg)

    # VMEM budget: double-buffered in + out blocks plus live f32 temporaries.
    itemsize = jnp.dtype(dtype).itemsize
    block_elems = sum(g_blk * n for n in lens)
    needed = (4 * block_elems * itemsize        # 2 bufs x (in + out) blocks
              + 2 * block_elems * 4             # f32 copy + centered temp
              + (4 << 20))                      # headroom
    cap = (3 * _vmem_cap_bytes()) // 4
    vmem_limit = int(min(max(needed, 32 << 20), cap))

    kernel = functools.partial(_fused_gn_kernel, num_levels=len(xg), eps=eps)

    outs = pl.pallas_call(
        kernel,
        out_shape=out_shape,
        grid_spec=pltpu.PrefetchScalarGridSpec(
            num_scalar_prefetch=0,
            grid=(b, gsplit),
            in_specs=in_specs,
            out_specs=out_specs,
        ),
        compiler_params=pltpu.CompilerParams(
            dimension_semantics=("parallel", "parallel"),
            vmem_limit_bytes=vmem_limit),
    )(*xg)

    # Free reshape back to the per-level (B, C, T) layout.
    return tuple(y.reshape(b, c, x.shape[2]) for y, x in zip(outs, xs))


class FPNIdentityPallas:
    """JAX/Pallas port of FPNIdentity (fpn_norm='groupnorm')."""

    def __init__(self, in_channels, out_channel, scale_factor=2.0,
                 start_level=0, end_level=-1, num_group=4,
                 fpn_norm='groupnorm'):
        self.in_channels = in_channels
        self.out_channel = out_channel
        self.scale_factor = scale_factor
        self.start_level = start_level
        self.end_level = len(in_channels) if end_level == -1 else end_level
        assert self.end_level <= len(in_channels)
        assert 0 <= self.start_level < self.end_level
        for i in range(self.start_level, self.end_level):
            assert in_channels[i] == out_channel
        self.num_group = num_group
        self.fpn_norm = fpn_norm
        # GroupNorm(affine=False) has no parameters -> nothing to initialize.

    def __call__(self, inputs, fpn_masks):
        assert len(inputs) == len(self.in_channels)
        assert len(fpn_masks) == len(self.in_channels)
        lo, hi = self.start_level, self.end_level
        xs = list(inputs[lo:hi])
        if self.fpn_norm == 'groupnorm':
            fpn_feats = fused_group_norm_pallas(xs, self.num_group)
        elif self.fpn_norm is None:
            fpn_feats = tuple(xs)
        else:
            # TODO(synk): 'layernorm' branch not implemented (custom LayerNorm
            # class is not part of this spec); only groupnorm/identity paths.
            raise NotImplementedError(self.fpn_norm)
        new_fpn_masks = tuple(fpn_masks[lo:hi])
        return fpn_feats, new_fpn_masks


def _group_norm_ref(x, num_groups, eps=1e-5):
    b, c, t = x.shape
    xg = x.reshape(b, num_groups, -1).astype(jnp.float32)
    mean = jnp.mean(xg, axis=-1, keepdims=True)
    var = jnp.mean((xg - mean) ** 2, axis=-1, keepdims=True)
    y = (xg - mean) / jnp.sqrt(var + eps)
    return y.reshape(b, c, t).astype(x.dtype)


if __name__ == "__main__":
    key = jax.random.PRNGKey(0)
    B, C = 2, 32
    num_group = 4
    level_T = [16, 8, 4]                      # pyramid of temporal lengths
    in_channels = [C] * len(level_T)

    keys = jax.random.split(key, 2 * len(level_T))
    inputs = tuple(
        jax.random.normal(keys[2 * i], (B, C, t), dtype=jnp.float32)
        for i, t in enumerate(level_T)
    )
    fpn_masks = tuple(
        jax.random.bernoulli(keys[2 * i + 1], 0.8, (B, 1, t))
        for i, t in enumerate(level_T)
    )

    neck = FPNIdentityPallas(in_channels, C, num_group=num_group,
                             fpn_norm='groupnorm')
    feats, masks = neck(inputs, fpn_masks)
    feats = jax.block_until_ready(feats)

    # check against pure-JAX reference of PyTorch GroupNorm semantics
    for x, y, m_in, m_out in zip(inputs, feats, fpn_masks, masks):
        ref = _group_norm_ref(x, num_group)
        assert y.shape == x.shape and y.dtype == x.dtype
        assert jnp.max(jnp.abs(y - ref)) < 1e-4
        assert (m_in == m_out).all()

    print("KERNEL_OK")
</pallas_src>

<mosaic_0001>
module attributes {stable_mosaic.version = 11 : i64} {
  func.func @_fused_gn_kernel(%arg0: i32, %arg1: i32, %arg2: memref<1x4x128xf32, #tpu.memory_space<vmem>>, %arg3: memref<1x4x64xf32, #tpu.memory_space<vmem>>, %arg4: memref<1x4x32xf32, #tpu.memory_space<vmem>>, %arg5: memref<1x4x128xf32, #tpu.memory_space<vmem>>, %arg6: memref<1x4x64xf32, #tpu.memory_space<vmem>>, %arg7: memref<1x4x32xf32, #tpu.memory_space<vmem>>) attributes {dimension_semantics = [#tpu.dimension_semantics<parallel>, #tpu.dimension_semantics<parallel>], iteration_bounds = array<i64: 2, 1>, scalar_prefetch = 0 : i64, scratch_operands = 0 : i64, tpu.core_type = #tpu.core_type<tc>, window_params = [{transform_indices = @transform_0, window_bounds = array<i64: 1, 4, 128>}, {transform_indices = @transform_1, window_bounds = array<i64: 1, 4, 64>}, {transform_indices = @transform_2, window_bounds = array<i64: 1, 4, 32>}, {transform_indices = @transform_3, window_bounds = array<i64: 1, 4, 128>}, {transform_indices = @transform_4, window_bounds = array<i64: 1, 4, 64>}, {transform_indices = @transform_5, window_bounds = array<i64: 1, 4, 32>}]} {
    %c0 = arith.constant 0 : index
    %c0_0 = arith.constant 0 : index
    %c0_1 = arith.constant 0 : index
    %0 = vector.load %arg2[%c0, %c0_0, %c0_1] : memref<1x4x128xf32, #tpu.memory_space<vmem>>, vector<1x4x128xf32>
    %1 = vector.shape_cast %0 : vector<1x4x128xf32> to vector<4x128xf32>
    %cst = arith.constant dense<0.000000e+00> : vector<4xf32>
    %2 = vector.multi_reduction <add>, %1, %cst [1] : vector<4x128xf32> to vector<4xf32>
    %3 = vector.shape_cast %2 : vector<4xf32> to vector<4x1xf32>
    %4 = arith.mulf %1, %1 : vector<4x128xf32>
    %cst_2 = arith.constant dense<0.000000e+00> : vector<4xf32>
    %5 = vector.multi_reduction <add>, %4, %cst_2 [1] : vector<4x128xf32> to vector<4xf32>
    %6 = vector.shape_cast %5 : vector<4xf32> to vector<4x1xf32>
    %cst_3 = arith.constant 7.812500e-03 : f32
    %7 = vector.broadcast %cst_3 : f32 to vector<4x1xf32>
    %8 = arith.mulf %3, %7 : vector<4x1xf32>
    %cst_4 = arith.constant 7.812500e-03 : f32
    %9 = vector.broadcast %cst_4 : f32 to vector<4x1xf32>
    %10 = arith.mulf %6, %9 : vector<4x1xf32>
    %11 = arith.mulf %8, %8 : vector<4x1xf32>
    %12 = arith.subf %10, %11 : vector<4x1xf32>
    %cst_5 = arith.constant 0.000000e+00 : f32
    %13 = vector.broadcast %cst_5 : f32 to vector<4x1xf32>
    %14 = arith.maximumf %12, %13 : vector<4x1xf32>
    %cst_6 = arith.constant 9.99999974E-6 : f32
    %15 = vector.broadcast %cst_6 : f32 to vector<4x1xf32>
    %16 = arith.addf %14, %15 : vector<4x1xf32>
    %17 = math.rsqrt %16 : vector<4x1xf32>
    %18 = vector.broadcast %8 : vector<4x1xf32> to vector<4x128xf32>
    %19 = arith.subf %1, %18 : vector<4x128xf32>
    %20 = vector.broadcast %17 : vector<4x1xf32> to vector<4x128xf32>
    %21 = arith.mulf %19, %20 : vector<4x128xf32>
    %c0_7 = arith.constant 0 : index
    %c0_8 = arith.constant 0 : index
    %c0_9 = arith.constant 0 : index
    %22 = vector.load %arg5[%c0_7, %c0_8, %c0_9] : memref<1x4x128xf32, #tpu.memory_space<vmem>>, vector<1x4x128xf32>
    %23 = vector.shape_cast %22 : vector<1x4x128xf32> to vector<4x128xf32>
    %24 = vector.shape_cast %21 : vector<4x128xf32> to vector<1x4x128xf32>
    tpu.vector_store %arg5[%c0_7, %c0_8, %c0_9], %24 {strides = array<i32>} : memref<1x4x128xf32, #tpu.memory_space<vmem>>, vector<1x4x128xf32>,
    %c0_10 = arith.constant 0 : index
    %c0_11 = arith.constant 0 : index
    %c0_12 = arith.constant 0 : index
    %25 = vector.load %arg3[%c0_10, %c0_11, %c0_12] : memref<1x4x64xf32, #tpu.memory_space<vmem>>, vector<1x4x64xf32>
    %26 = vector.shape_cast %25 : vector<1x4x64xf32> to vector<4x64xf32>
    %cst_13 = arith.constant dense<0.000000e+00> : vector<4xf32>
    %27 = vector.multi_reduction <add>, %26, %cst_13 [1] : vector<4x64xf32> to vector<4xf32>
    %28 = vector.shape_cast %27 : vector<4xf32> to vector<4x1xf32>
    %29 = arith.mulf %26, %26 : vector<4x64xf32>
    %cst_14 = arith.constant dense<0.000000e+00> : vector<4xf32>
    %30 = vector.multi_reduction <add>, %29, %cst_14 [1] : vector<4x64xf32> to vector<4xf32>
    %31 = vector.shape_cast %30 : vector<4xf32> to vector<4x1xf32>
    %cst_15 = arith.constant 1.562500e-02 : f32
    %32 = vector.broadcast %cst_15 : f32 to vector<4x1xf32>
    %33 = arith.mulf %28, %32 : vector<4x1xf32>
    %cst_16 = arith.constant 1.562500e-02 : f32
    %34 = vector.broadcast %cst_16 : f32 to vector<4x1xf32>
    %35 = arith.mulf %31, %34 : vector<4x1xf32>
    %36 = arith.mulf %33, %33 : vector<4x1xf32>
    %37 = arith.subf %35, %36 : vector<4x1xf32>
    %cst_17 = arith.constant 0.000000e+00 : f32
    %38 = vector.broadcast %cst_17 : f32 to vector<4x1xf32>
    %39 = arith.maximumf %37, %38 : vector<4x1xf32>
    %cst_18 = arith.constant 9.99999974E-6 : f32
    %40 = vector.broadcast %cst_18 : f32 to vector<4x1xf32>
    %41 = arith.addf %39, %40 : vector<4x1xf32>
    %42 = math.rsqrt %41 : vector<4x1xf32>
    %43 = vector.broadcast %33 : vector<4x1xf32> to vector<4x64xf32>
    %44 = arith.subf %26, %43 : vector<4x64xf32>
    %45 = vector.broadcast %42 : vector<4x1xf32> to vector<4x64xf32>
    %46 = arith.mulf %44, %45 : vector<4x64xf32>
    %c0_19 = arith.constant 0 : index
    %c0_20 = arith.constant 0 : index
    %c0_21 = arith.constant 0 : index
    %47 = vector.load %arg6[%c0_19, %c0_20, %c0_21] : memref<1x4x64xf32, #tpu.memory_space<vmem>>, vector<1x4x64xf32>
    %48 = vector.shape_cast %47 : vector<1x4x64xf32> to vector<4x64xf32>
    %49 = vector.shape_cast %46 : vector<4x64xf32> to vector<1x4x64xf32>
    tpu.vector_store %arg6[%c0_19, %c0_20, %c0_21], %49 {strides = array<i32>} : memref<1x4x64xf32, #tpu.memory_space<vmem>>, vector<1x4x64xf32>,
    %c0_22 = arith.constant 0 : index
    %c0_23 = arith.constant 0 : index
    %c0_24 = arith.constant 0 : index
    %50 = vector.load %arg4[%c0_22, %c0_23, %c0_24] : memref<1x4x32xf32, #tpu.memory_space<vmem>>, vector<1x4x32xf32>
    %51 = vector.shape_cast %50 : vector<1x4x32xf32> to vector<4x32xf32>
    %cst_25 = arith.constant dense<0.000000e+00> : vector<4xf32>
    %52 = vector.multi_reduction <add>, %51, %cst_25 [1] : vector<4x32xf32> to vector<4xf32>
    %53 = vector.shape_cast %52 : vector<4xf32> to vector<4x1xf32>
    %54 = arith.mulf %51, %51 : vector<4x32xf32>
    %cst_26 = arith.constant dense<0.000000e+00> : vector<4xf32>
    %55 = vector.multi_reduction <add>, %54, %cst_26 [1] : vector<4x32xf32> to vector<4xf32>
    %56 = vector.shape_cast %55 : vector<4xf32> to vector<4x1xf32>
    %cst_27 = arith.constant 3.125000e-02 : f32
    %57 = vector.broadcast %cst_27 : f32 to vector<4x1xf32>
    %58 = arith.mulf %53, %57 : vector<4x1xf32>
    %cst_28 = arith.constant 3.125000e-02 : f32
    %59 = vector.broadcast %cst_28 : f32 to vector<4x1xf32>
    %60 = arith.mulf %56, %59 : vector<4x1xf32>
    %61 = arith.mulf %58, %58 : vector<4x1xf32>
    %62 = arith.subf %60, %61 : vector<4x1xf32>
    %cst_29 = arith.constant 0.000000e+00 : f32
    %63 = vector.broadcast %cst_29 : f32 to vector<4x1xf32>
    %64 = arith.maximumf %62, %63 : vector<4x1xf32>
    %cst_30 = arith.constant 9.99999974E-6 : f32
    %65 = vector.broadcast %cst_30 : f32 to vector<4x1xf32>
    %66 = arith.addf %64, %65 : vector<4x1xf32>
    %67 = math.rsqrt %66 : vector<4x1xf32>
    %68 = vector.broadcast %58 : vector<4x1xf32> to vector<4x32xf32>
    %69 = arith.subf %51, %68 : vector<4x32xf32>
    %70 = vector.broadcast %67 : vector<4x1xf32> to vector<4x32xf32>
    %71 = arith.mulf %69, %70 : vector<4x32xf32>
    %c0_31 = arith.constant 0 : index
    %c0_32 = arith.constant 0 : index
    %c0_33 = arith.constant 0 : index
    %72 = vector.load %arg7[%c0_31, %c0_32, %c0_33] : memref<1x4x32xf32, #tpu.memory_space<vmem>>, vector<1x4x32xf32>
    %73 = vector.shape_cast %72 : vector<1x4x32xf32> to vector<4x32xf32>
    %74 = vector.shape_cast %71 : vector<4x32xf32> to vector<1x4x32xf32>
    tpu.vector_store %arg7[%c0_31, %c0_32, %c0_33], %74 {strides = array<i32>} : memref<1x4x32xf32, #tpu.memory_space<vmem>>, vector<1x4x32xf32>,
    return
  }
  func.func @transform_0(%arg0: i32, %arg1: i32) -> (i32, i32, i32) {
    %c0_i32 = arith.constant 0 : i32
    %c0_i32_0 = arith.constant 0 : i32
    return %arg0, %arg1, %c0_i32 : i32, i32, i32
  }
  func.func @transform_1(%arg0: i32, %arg1: i32) -> (i32, i32, i32) {
    %c0_i32 = arith.constant 0 : i32
    %c0_i32_0 = arith.constant 0 : i32
    return %arg0, %arg1, %c0_i32 : i32, i32, i32
  }
  func.func @transform_2(%arg0: i32, %arg1: i32) -> (i32, i32, i32) {
    %c0_i32 = arith.constant 0 : i32
    %c0_i32_0 = arith.constant 0 : i32
    return %arg0, %arg1, %c0_i32 : i32, i32, i32
  }
  func.func @transform_3(%arg0: i32, %arg1: i32) -> (i32, i32, i32) {
    %c0_i32 = arith.constant 0 : i32
    %c0_i32_0 = arith.constant 0 : i32
    return %arg0, %arg1, %c0_i32 : i32, i32, i32
  }
  func.func @transform_4(%arg0: i32, %arg1: i32) -> (i32, i32, i32) {
    %c0_i32 = arith.constant 0 : i32
    %c0_i32_0 = arith.constant 0 : i32
    return %arg0, %arg1, %c0_i32 : i32, i32, i32
  }
  func.func @transform_5(%arg0: i32, %arg1: i32) -> (i32, i32, i32) {
    %c0_i32 = arith.constant 0 : i32
    %c0_i32_0 = arith.constant 0 : i32
    return %arg0, %arg1, %c0_i32 : i32, i32, i32
  }
}

</mosaic_0001>

<llo_original>
// kernel: tpu_custom_call.1
$region0: #{tpu_custom_call.1}
  #allocation0 [shape = 'u32[]', space=smem, size = 0x4, offset = 0x4, fixed_abs, tag = 'smem constant byte address 0x4 - core index']
  #allocation1 [shape = 'u32[144,128]{1,0:T(1,128)}', space=vmem, size = 0x12000, scoped, tag = 'internal scratch']
  %s0 = inlined_call_operand.hbm [shape: f32[2,4,128], index: 0, kind: input, shape index: {}]
  %s1 = inlined_call_operand.hbm [shape: f32[2,4,64], index: 1, kind: input, shape index: {}]
  %s2 = inlined_call_operand.hbm [shape: f32[2,4,32], index: 2, kind: input, shape index: {}]
  %s3 = inlined_call_operand.hbm [shape: f32[2,4,128], index: 3, kind: output, shape index: {0}]
  %s4 = inlined_call_operand.hbm [shape: f32[2,4,64], index: 4, kind: output, shape index: {1}]
  %s5 = inlined_call_operand.hbm [shape: f32[2,4,32], index: 5, kind: output, shape index: {2}]
  %6 = xla_tuple %s3, %s4, %s5
  %s7 = sld [smem:[#allocation0]]
  $region73: #{tpu_custom_call.1} parent=0
    _
  %s9 = ssub.s32 1, %s7
  %s10 = scalar_select 0, %s9, %s7
  $region1: #{tpu_custom_call.1} parent=0
    #allocation2 [shape = 'u8[4096]{0}', space=vmem, size = 0x1000, scoped, tag = 'input window, operand 0']
    #allocation3 [shape = 's32[2]{0}', space=sflag, size = 0x8, scoped, tag = 'scoped memory for tpu_custom_call.1']
    #allocation4 [shape = 's32[2]{0}', space=sflag, size = 0x8, scoped, tag = 'scoped memory for tpu_custom_call.1']
    #allocation5 [shape = 'u8[4096]{0}', space=vmem, size = 0x1000, scoped, tag = 'input window, operand 1']
    #allocation6 [shape = 's32[2]{0}', space=sflag, size = 0x8, scoped, tag = 'scoped memory for tpu_custom_call.1']
    #allocation7 [shape = 'u8[4096]{0}', space=vmem, size = 0x1000, scoped, tag = 'input window, operand 2']
    #allocation8 [shape = 'u8[4096]{0}', space=vmem, size = 0x1000, scoped, tag = 'output window, operand 0']
    #allocation9 [shape = 'u8[4096]{0}', space=vmem, size = 0x1000, scoped, tag = 'output window, operand 1']
    #allocation10 [shape = 's32[2]{0}', space=sflag, size = 0x8, scoped, tag = 'scoped memory for tpu_custom_call.1']
    #allocation11 [shape = 'u8[4096]{0}', space=vmem, size = 0x1000, scoped, tag = 'output window, operand 2']
    %11 = vsyncpa [#allocation3], 0
    %s12 = scalar_lea.sflag [#allocation3], 1
    %13 = vsyncpa %s12, 0
    %14 = vsyncpa [#allocation6], 0
    %s15 = scalar_lea.sflag [#allocation6], 1
    %16 = vsyncpa %s15, 0
    %17 = vsyncpa [#allocation4], 0
    %s18 = scalar_lea.sflag [#allocation4], 1
    %19 = vsyncpa %s18, 0
    %20 = vsyncpa [#allocation10], 0
    %s21 = scalar_lea.sflag [#allocation10], 1
    %22 = vsyncpa %s21, 0
    loop: start=0, step=1, limit=4
    $region2: #{tpu_custom_call.1} parent=1 // loop_pre_header
      _
    $region3: #{tpu_custom_call.1} parent=1 // loop_header
      %s24 = sphi 0, %s28
      %p25 = scmp.ge.s32.totalorder %s24, 4
      %s31 = sphi 0, %s43
      %s32 = sphi 0, %s39
      %s33 = sphi 0, %s31
      %s34 = sphi 0, %s32
      %s35 = sphi 0, %s33
      %s36 = sphi 0, %s34
      %s48 = sphi 0, %s50
      %s51 = sphi 0, %s48
      %s52 = sphi 0, %s51
      %s68 = sphi 0, %s52
      %s76 = sphi 0, %s78
      %s79 = sphi 0, %s76
      %s80 = sphi 0, %s79
      %s96 = sphi 0, %s80
      %s104 = sphi 0, %s106
      %s107 = sphi 0, %s104
      %s108 = sphi 0, %s107
      %s124 = sphi 0, %s108
      %s132 = sphi 0, %s134
      %s135 = sphi 0, %s132
      %s136 = sphi 0, %s135
      %s152 = sphi 0, %s136
      %s160 = sphi 0, %s162
      %s163 = sphi 0, %s160
      %s164 = sphi 0, %s163
      %s180 = sphi 0, %s164
      %s188 = sphi 0, %s190
      %s191 = sphi 0, %s188
      %s192 = sphi 0, %s191
      %s208 = sphi 0, %s192
    $region4: #{tpu_custom_call.1} parent=1 // loop_header_branch
      %27 = sbr.rel (%p25) target = $region8
    $region5: #{tpu_custom_call.1} parent=1 // loop_body
      %s29 = ssub.s32 %s24, 1
      %s30 = ssub.s32 %s24, 2
      %s37 = sadd.s32 1, %s32
      %p38 = scmp.ge.s32.totalorder %s37, 1
      %s39 = scalar_select %p38, 0, %s37
      %s40 = sadd.s32 1, %s31
      %s41 = scalar_select %p38, %s40, %s31
      %p42 = scmp.ge.s32.totalorder %s41, 2
      %s43 = scalar_select %p42, 0, %s41
      %s44 = ssub.s32 %s31, %s43
      %s45 = ssub.s32 %s32, %s39
      %s46 = sor.u32 %s44, %s45
      %p47 = scmp.eq.s32.totalorder %s46, 0
      %s49 = sadd.s32 %s48, 1
      %s50 = scalar_select %p47, %s48, %s49
      %p53 = pneg %p47
      %p54 = scmp.eq.s32.totalorder %s24, 1
      %p55 = por %p53, %p54
      %p56 = scmp.ne.s32.totalorder %s48, %s51
      %p57 = scmp.eq.s32.totalorder %s24, 0
      %p58 = por %p56, %p57
      %p59 = scmp.ne.s32.totalorder %s48, %s51
      %p60 = scmp.eq.s32.totalorder %s29, 1
      %p61 = por %p59, %p60
      %p62 = scmp.ne.s32.totalorder %s51, %s52
      %p63 = scmp.eq.s32.totalorder %s29, 0
      %p64 = por %p62, %p63
      %p65 = scmp.ne.s32.totalorder %s51, %s52
      %p66 = scmp.eq.s32.totalorder %s30, 1
      %p67 = por %p65, %p66
      %p69 = scmp.ne.s32.totalorder %s52, %s68
      %p70 = scmp.eq.s32.totalorder %s30, 0
      %p71 = por %p69, %p70
      %s72 = ssub.s32 %s31, %s43
      %s73 = ssub.s32 %s32, %s39
      %s74 = sor.u32 %s72, %s73
      %p75 = scmp.eq.s32.totalorder %s74, 0
      %s77 = sadd.s32 %s76, 1
      %s78 = scalar_select %p75, %s76, %s77
      %p81 = pneg %p75
      %p82 = scmp.eq.s32.totalorder %s24, 1
      %p83 = por %p81, %p82
      %p84 = scmp.ne.s32.totalorder %s76, %s79
      %p85 = scmp.eq.s32.totalorder %s24, 0
      %p86 = por %p84, %p85
      %p87 = scmp.ne.s32.totalorder %s76, %s79
      %p88 = scmp.eq.s32.totalorder %s29, 1
      %p89 = por %p87, %p88
      %p90 = scmp.ne.s32.totalorder %s79, %s80
      %p91 = scmp.eq.s32.totalorder %s29, 0
      %p92 = por %p90, %p91
      %p93 = scmp.ne.s32.totalorder %s79, %s80
      %p94 = scmp.eq.s32.totalorder %s30, 1
      %p95 = por %p93, %p94
      %p97 = scmp.ne.s32.totalorder %s80, %s96
      %p98 = scmp.eq.s32.totalorder %s30, 0
      %p99 = por %p97, %p98
      %s100 = ssub.s32 %s31, %s43
      %s101 = ssub.s32 %s32, %s39
      %s102 = sor.u32 %s100, %s101
      %p103 = scmp.eq.s32.totalorder %s102, 0
      %s105 = sadd.s32 %s104, 1
      %s106 = scalar_select %p103, %s104, %s105
      %p109 = pneg %p103
      %p110 = scmp.eq.s32.totalorder %s24, 1
      %p111 = por %p109, %p110
      %p112 = scmp.ne.s32.totalorder %s104, %s107
      %p113 = scmp.eq.s32.totalorder %s24, 0
      %p114 = por %p112, %p113
      %p115 = scmp.ne.s32.totalorder %s104, %s107
      %p116 = scmp.eq.s32.totalorder %s29, 1
      %p117 = por %p115, %p116
      %p118 = scmp.ne.s32.totalorder %s107, %s108
      %p119 = scmp.eq.s32.totalorder %s29, 0
      %p120 = por %p118, %p119
      %p121 = scmp.ne.s32.totalorder %s107, %s108
      %p122 = scmp.eq.s32.totalorder %s30, 1
      %p123 = por %p121, %p122
      %p125 = scmp.ne.s32.totalorder %s108, %s124
      %p126 = scmp.eq.s32.totalorder %s30, 0
      %p127 = por %p125, %p126
      %s128 = ssub.s32 %s31, %s43
      %s129 = ssub.s32 %s32, %s39
      %s130 = sor.u32 %s128, %s129
      %p131 = scmp.eq.s32.totalorder %s130, 0
      %s133 = sadd.s32 %s132, 1
      %s134 = scalar_select %p131, %s132, %s133
      %p137 = pneg %p131
      %p138 = scmp.eq.s32.totalorder %s24, 1
      %p139 = por %p137, %p138
      %p140 = scmp.ne.s32.totalorder %s132, %s135
      %p141 = scmp.eq.s32.totalorder %s24, 0
      %p142 = por %p140, %p141
      %p143 = scmp.ne.s32.totalorder %s132, %s135
      %p144 = scmp.eq.s32.totalorder %s29, 1
      %p145 = por %p143, %p144
      %p146 = scmp.ne.s32.totalorder %s135, %s136
      %p147 = scmp.eq.s32.totalorder %s29, 0
      %p148 = por %p146, %p147
      %p149 = scmp.ne.s32.totalorder %s135, %s136
      %p150 = scmp.eq.s32.totalorder %s30, 1
      %p151 = por %p149, %p150
      %p153 = scmp.ne.s32.totalorder %s136, %s152
      %p154 = scmp.eq.s32.totalorder %s30, 0
      %p155 = por %p153, %p154
      %s156 = ssub.s32 %s31, %s43
      %s157 = ssub.s32 %s32, %s39
      %s158 = sor.u32 %s156, %s157
      %p159 = scmp.eq.s32.totalorder %s158, 0
      %s161 = sadd.s32 %s160, 1
      %s162 = scalar_select %p159, %s160, %s161
      %p165 = pneg %p159
      %p166 = scmp.eq.s32.totalorder %s24, 1
      %p167 = por %p165, %p166
      %p168 = scmp.ne.s32.totalorder %s160, %s163
      %p169 = scmp.eq.s32.totalorder %s24, 0
      %p170 = por %p168, %p169
      %p171 = scmp.ne.s32.totalorder %s160, %s163
      %p172 = scmp.eq.s32.totalorder %s29, 1
      %p173 = por %p171, %p172
      %p174 = scmp.ne.s32.totalorder %s163, %s164
      %p175 = scmp.eq.s32.totalorder %s29, 0
      %p176 = por %p174, %p175
      %p177 = scmp.ne.s32.totalorder %s163, %s164
      %p178 = scmp.eq.s32.totalorder %s30, 1
      %p179 = por %p177, %p178
      %p181 = scmp.ne.s32.totalorder %s164, %s180
      %p182 = scmp.eq.s32.totalorder %s30, 0
      %p183 = por %p181, %p182
      %s184 = ssub.s32 %s31, %s43
      %s185 = ssub.s32 %s32, %s39
      %s186 = sor.u32 %s184, %s185
      %p187 = scmp.eq.s32.totalorder %s186, 0
      %s189 = sadd.s32 %s188, 1
      %s190 = scalar_select %p187, %s188, %s189
      %p193 = pneg %p187
      %p194 = scmp.eq.s32.totalorder %s24, 1
      %p195 = por %p193, %p194
      %p196 = scmp.ne.s32.totalorder %s188, %s191
      %p197 = scmp.eq.s32.totalorder %s24, 0
      %p198 = por %p196, %p197
      %p199 = scmp.ne.s32.totalorder %s188, %s191
      %p200 = scmp.eq.s32.totalorder %s29, 1
      %p201 = por %p199, %p200
      %p202 = scmp.ne.s32.totalorder %s191, %s192
      %p203 = scmp.eq.s32.totalorder %s29, 0
      %p204 = por %p202, %p203
      %p205 = scmp.ne.s32.totalorder %s191, %s192
      %p206 = scmp.eq.s32.totalorder %s30, 1
      %p207 = por %p205, %p206
      %p209 = scmp.ne.s32.totalorder %s192, %s208
      %p210 = scmp.eq.s32.totalorder %s30, 0
      %p211 = por %p209, %p210
      %p212 = scmp.le.s32.totalorder 1, %s24
      %p213 = scmp.lt.s32.totalorder %s24, 3
      %p214 = pnand %p212, %p213
      %p215 = pneg %p214
      // Predicated region
      $region9: #{tpu_custom_call.1} parent=5 // pred_check
        _
      $region10: #{tpu_custom_call.1} parent=5 // pred_check_branch
        %217 = sbr.rel (%p214) target = $region12
      $region11: #{tpu_custom_call.1} parent=5 // pred_region
        %s218 = ssub.s32 %s24, 1
      $region12: #{tpu_custom_call.1} parent=5 // pred_fallthru
        _
      %p219 = scmp.lt.s32.totalorder %s24, 2
      // Predicated region
      $region13: #{tpu_custom_call.1} parent=5 // pred_check
        %p220 = pneg %p219
      $region14: #{tpu_custom_call.1} parent=5 // pred_check_branch
        %222 = sbr.rel (%p220) target = $region16
      $region15: #{tpu_custom_call.1} parent=5 // pred_region
        // Predicated region
        $region17: #{tpu_custom_call.1} parent=15 // pred_check
          %p223 = pneg %p58
        $region18: #{tpu_custom_call.1} parent=15 // pred_check_branch
          %225 = sbr.rel (%p223) target = $region20
        $region19: #{tpu_custom_call.1} parent=15 // pred_region
          %s226 = sand.u32 %s48, 1
          %s227 = scalar_lea.sflag [#allocation3], %s226
          %s228 = sand.u32 %s48, 1
          %s229 = smul.addr %s228, 4
          %s230 = scalar_lea.vmem [#allocation2], %s229
          %s232 = ssub.s32 64, 64
          %233 = vsyncadd %s227, %s232
          %s234 = sadd.s32 %s32, %s31
          %s235 = smul.addr %s234, 64
          %s236 = scalar_lea.hbm %s0, %s235
          %s238 = sshll.u32 %s230, 4
          %s239 = int_to_ptr.vmem [resolvable:$true] %s238
          %241 = dma.hbm_to_vmem [thread:$0]  %s236, 64, %s239, %s227
        $region20: #{tpu_custom_call.1} parent=15 // pred_fallthru
          _
        // Predicated region
        $region21: #{tpu_custom_call.1} parent=15 // pred_check
          %p242 = pneg %p86
        $region22: #{tpu_custom_call.1} parent=15 // pred_check_branch
          %244 = sbr.rel (%p242) target = $region24
        $region23: #{tpu_custom_call.1} parent=15 // pred_region
          %s245 = sand.u32 %s24, 1
          %s246 = scalar_lea.sflag [#allocation6], %s245
          %s247 = sand.u32 %s76, 1
          %s248 = smul.addr %s247, 4
          %s249 = scalar_lea.vmem [#allocation5], %s248
          %s251 = ssub.s32 64, 64
          %252 = vsyncadd %s246, %s251
          %s253 = sadd.s32 %s32, %s31
          %s254 = smul.addr %s253, 64
          %s255 = scalar_lea.hbm %s1, %s254
          %s257 = sshll.u32 %s249, 4
          %s258 = int_to_ptr.vmem [resolvable:$true] %s257
          %260 = dma.hbm_to_vmem [thread:$0]  %s255, 64, %s258, %s246
        $region24: #{tpu_custom_call.1} parent=15 // pred_fallthru
          _
        // Predicated region
        $region25: #{tpu_custom_call.1} parent=15 // pred_check
          %p261 = pneg %p114
        $region26: #{tpu_custom_call.1} parent=15 // pred_check_branch
          %263 = sbr.rel (%p261) target = $region28
        $region27: #{tpu_custom_call.1} parent=15 // pred_region
          %s264 = sand.u32 %s24, 1
          %s265 = scalar_lea.sflag [#allocation6], %s264
          %s266 = sand.u32 %s104, 1
          %s267 = smul.addr %s266, 4
          %s268 = scalar_lea.vmem [#allocation7], %s267
          %s270 = ssub.s32 64, 64
          %271 = vsyncadd %s265, %s270
          %s272 = sadd.s32 %s32, %s31
          %s273 = smul.addr %s272, 64
          %s274 = scalar_lea.hbm %s2, %s273
          %s276 = sshll.u32 %s268, 4
          %s277 = int_to_ptr.vmem [resolvable:$true] %s276
          %279 = dma.hbm_to_vmem [thread:$0]  %s274, 64, %s277, %s265
        $region28: #{tpu_custom_call.1} parent=15 // pred_fallthru
          _
      $region16: #{tpu_custom_call.1} parent=5 // pred_fallthru
        _
      %p280 = scmp.le.s32.totalorder 1, %s24
      %p281 = scmp.lt.s32.totalorder %s24, 3
      %p282 = pnand %p280, %p281
      %p283 = pneg %p282
      // Predicated region
      $region29: #{tpu_custom_call.1} parent=5 // pred_check
        _
      $region30: #{tpu_custom_call.1} parent=5 // pred_check_branch
        %285 = sbr.rel (%p282) target = $region32
      $region31: #{tpu_custom_call.1} parent=5 // pred_region
        %s286 = ssub.s32 %s24, 1
        %s287 = sand.u32 %s51, 1
        %s288 = scalar_lea.sflag [#allocation3], %s287
        %s289 = sand.u32 %s51, 1
        %s290 = smul.addr %s289, 4
        %s291 = scalar_lea.vmem [#allocation2], %s290
        // Predicated region
        $region33: #{tpu_custom_call.1} parent=31 // pred_check
          %p292 = pneg %p64
        $region34: #{tpu_custom_call.1} parent=31 // pred_check_branch
          %294 = sbr.rel (%p292) target = $region36
        $region35: #{tpu_custom_call.1} parent=31 // pred_region
          %295 = dma.done %s288, 64
        $region36: #{tpu_custom_call.1} parent=31 // pred_fallthru
          _
        %s296 = sand.u32 %s29, 1
        %s297 = scalar_lea.sflag [#allocation6], %s296
        %s298 = sand.u32 %s79, 1
        %s299 = smul.addr %s298, 4
        %s300 = scalar_lea.vmem [#allocation5], %s299
        // Predicated region
        $region37: #{tpu_custom_call.1} parent=31 // pred_check
          %p301 = pneg %p92
        $region38: #{tpu_custom_call.1} parent=31 // pred_check_branch
          %303 = sbr.rel (%p301) target = $region40
        $region39: #{tpu_custom_call.1} parent=31 // pred_region
          %304 = dma.done %s297, 64
        $region40: #{tpu_custom_call.1} parent=31 // pred_fallthru
          _
        %s305 = sand.u32 %s29, 1
        %s306 = scalar_lea.sflag [#allocation6], %s305
        %s307 = sand.u32 %s107, 1
        %s308 = smul.addr %s307, 4
        %s309 = scalar_lea.vmem [#allocation7], %s308
        // Predicated region
        $region41: #{tpu_custom_call.1} parent=31 // pred_check
          %p310 = pneg %p120
        $region42: #{tpu_custom_call.1} parent=31 // pred_check_branch
          %312 = sbr.rel (%p310) target = $region44
        $region43: #{tpu_custom_call.1} parent=31 // pred_region
          %313 = dma.done %s306, 64
        $region44: #{tpu_custom_call.1} parent=31 // pred_fallthru
          _
        %s314 = sand.u32 %s51, 1
        %s315 = scalar_lea.sflag [#allocation3], %s314
        %s316 = sand.u32 %s51, 1
        %s317 = smul.addr %s316, 4
        %s318 = scalar_lea.vmem [#allocation2], %s317
        %p319 = pneg %p64
        %p320 = pneg %p61
        %s321 = sand.u32 %s29, 1
        %s322 = scalar_lea.sflag [#allocation6], %s321
        %s323 = sand.u32 %s79, 1
        %s324 = smul.addr %s323, 4
        %s325 = scalar_lea.vmem [#allocation5], %s324
        %p326 = pneg %p92
        %p327 = pneg %p89
        %s328 = sand.u32 %s29, 1
        %s329 = scalar_lea.sflag [#allocation6], %s328
        %s330 = sand.u32 %s107, 1
        %s331 = smul.addr %s330, 4
        %s332 = scalar_lea.vmem [#allocation7], %s331
        %p333 = pneg %p120
        %p334 = pneg %p117
        %p335 = pneg %p148
        %p336 = pneg %p145
        %s337 = sand.u32 %s135, 1
        %s338 = scalar_lea.sflag [#allocation4], %s337
        %s339 = sand.u32 %s135, 1
        %s340 = smul.addr %s339, 4
        %s341 = scalar_lea.vmem [#allocation8], %s340
        %p342 = pneg %p176
        %p343 = pneg %p173
        %s344 = sand.u32 %s29, 1
        %s345 = scalar_lea.sflag [#allocation10], %s344
        %s346 = sand.u32 %s163, 1
        %s347 = smul.addr %s346, 4
        %s348 = scalar_lea.vmem [#allocation9], %s347
        %p349 = pneg %p204
        %p350 = pneg %p201
        %s351 = sand.u32 %s29, 1
        %s352 = scalar_lea.sflag [#allocation10], %s351
        %s353 = sand.u32 %s191, 1
        %s354 = smul.addr %s353, 4
        %s355 = scalar_lea.vmem [#allocation11], %s354
        %v356 = vld [vmem:[%s291] sm:$0xf]
        %vm357 = vcmask 1043456
        %v358 = vsel %vm357, %v356, 0.0
        %359 = vadd.xlane.f32.xlu0 %v358
        %v360 = vpop.xlane.xlu0 %359
        %v361 = vmul.f32 %v356, %v356
        %v362 = vsel %vm357, %v361, 0.0
        %363 = vadd.xlane.f32.xlu0 %v362
        %v364 = vpop.xlane.xlu0 %363
        %v365 = vmul.f32 %v360, 0.0078125
        %v366 = vmul.f32 %v364, 0.0078125
        %v367 = vmul.f32 %v365, %v365
        %v368 = vsub.f32 %v366, %v367
        %v369 = vmax.f32 %v368, 0.0
        %v370 = vadd.f32 %v369, 1e-05
        %v371 = vrsqrt.pop %v370
        %v372 = vsub.f32 %v356, %v365
        %v373 = vmul.f32 %v372, %v371
        %374 = vst [vmem:[%s341] sm:$0xf] %v373
        %v375 = vld [vmem:[%s300] sm:$0xf]
        %vm376 = vcmask 519168
        %v377 = vsel %vm376, %v375, 0.0
        %378 = vadd.xlane.f32.xlu0 %v377
        %v379 = vpop.xlane.xlu0 %378
        %v380 = vmul.f32 %v375, %v375
        %v381 = vsel %vm376, %v380, 0.0
        %382 = vadd.xlane.f32.xlu0 %v381
        %v383 = vpop.xlane.xlu0 %382
        %v384 = vmul.f32 %v379, 0.015625
        %v385 = vmul.f32 %v383, 0.015625
        %v386 = vmul.f32 %v384, %v384
        %v387 = vsub.f32 %v385, %v386
        %v388 = vmax.f32 %v387, 0.0
        %v389 = vadd.f32 %v388, 1e-05
        %v390 = vrsqrt.pop %v389
        %v391 = vsub.f32 %v375, %v384
        %v392 = vmul.f32 %v391, %v390
        %393 = vst.msk [vmem:[%s348] sm:$0xf] %vm376, %v392
        %v394 = vld [vmem:[%s309] sm:$0xf]
        %vm395 = vcmask 257024
        %v396 = vsel %vm395, %v394, 0.0
        %397 = vadd.xlane.f32.xlu0 %v396
        %v398 = vpop.xlane.xlu0 %397
        %v399 = vmul.f32 %v394, %v394
        %v400 = vsel %vm395, %v399, 0.0
        %401 = vadd.xlane.f32.xlu0 %v400
        %v402 = vpop.xlane.xlu0 %401
        %v403 = vmul.f32 %v398, 0.03125
        %v404 = vmul.f32 %v402, 0.03125
        %v405 = vmul.f32 %v403, %v403
        %v406 = vsub.f32 %v404, %v405
        %v407 = vmax.f32 %v406, 0.0
        %v408 = vadd.f32 %v407, 1e-05
        %v409 = vrsqrt.pop %v408
        %v410 = vsub.f32 %v394, %v403
        %v411 = vmul.f32 %v410, %v409
        %412 = vst.msk [vmem:[%s355] sm:$0xf] %vm395, %v411
        %s413 = sand.u32 %s135, 1
        %s414 = scalar_lea.sflag [#allocation4], %s413
        %s415 = sand.u32 %s135, 1
        %s416 = smul.addr %s415, 4
        %s417 = scalar_lea.vmem [#allocation8], %s416
        %s418 = sand.u32 %s29, 1
        %s419 = scalar_lea.sflag [#allocation10], %s418
        %s420 = sand.u32 %s163, 1
        %s421 = smul.addr %s420, 4
        %s422 = scalar_lea.vmem [#allocation9], %s421
        %s423 = sand.u32 %s29, 1
        %s424 = scalar_lea.sflag [#allocation10], %s423
        %s425 = sand.u32 %s191, 1
        %s426 = smul.addr %s425, 4
        %s427 = scalar_lea.vmem [#allocation11], %s426
        // Predicated region
        $region45: #{tpu_custom_call.1} parent=31 // pred_check
          %p428 = pneg %p145
        $region46: #{tpu_custom_call.1} parent=31 // pred_check_branch
          %430 = sbr.rel (%p428) target = $region48
        $region47: #{tpu_custom_call.1} parent=31 // pred_region
          %s432 = ssub.s32 64, 64
          %433 = vsyncadd %s414, %s432
          %s434 = sadd.s32 %s34, %s33
          %s435 = smul.addr %s434, 64
          %s436 = scalar_lea.hbm %s3, %s435
          %s438 = sshll.u32 %s417, 4
          %s439 = int_to_ptr.vmem [resolvable:$true] %s438
          %441 = dma.vmem_to_hbm [thread:$0]  %s439, 64, %s436, %s414
        $region48: #{tpu_custom_call.1} parent=31 // pred_fallthru
          _
        // Predicated region
        $region49: #{tpu_custom_call.1} parent=31 // pred_check
          %p442 = pneg %p173
        $region50: #{tpu_custom_call.1} parent=31 // pred_check_branch
          %444 = sbr.rel (%p442) target = $region52
        $region51: #{tpu_custom_call.1} parent=31 // pred_region
          %s446 = ssub.s32 64, 64
          %447 = vsyncadd %s419, %s446
          %s448 = sadd.s32 %s34, %s33
          %s449 = smul.addr %s448, 64
          %s450 = scalar_lea.hbm %s4, %s449
          %s452 = sshll.u32 %s422, 4
          %s453 = int_to_ptr.vmem [resolvable:$true] %s452
          %455 = dma.vmem_to_hbm [thread:$0]  %s453, 64, %s450, %s419
        $region52: #{tpu_custom_call.1} parent=31 // pred_fallthru
          _
        // Predicated region
        $region53: #{tpu_custom_call.1} parent=31 // pred_check
          %p456 = pneg %p201
        $region54: #{tpu_custom_call.1} parent=31 // pred_check_branch
          %458 = sbr.rel (%p456) target = $region56
        $region55: #{tpu_custom_call.1} parent=31 // pred_region
          %s460 = ssub.s32 64, 64
          %461 = vsyncadd %s424, %s460
          %s462 = sadd.s32 %s34, %s33
          %s463 = smul.addr %s462, 64
          %s464 = scalar_lea.hbm %s5, %s463
          %s466 = sshll.u32 %s427, 4
          %s467 = int_to_ptr.vmem [resolvable:$true] %s466
          %469 = dma.vmem_to_hbm [thread:$0]  %s467, 64, %s464, %s424
        $region56: #{tpu_custom_call.1} parent=31 // pred_fallthru
          _
      $region32: #{tpu_custom_call.1} parent=5 // pred_fallthru
        _
      %p470 = scmp.le.s32.totalorder 2, %s24
      // Predicated region
      $region57: #{tpu_custom_call.1} parent=5 // pred_check
        %p471 = pneg %p470
      $region58: #{tpu_custom_call.1} parent=5 // pred_check_branch
        %473 = sbr.rel (%p471) target = $region60
      $region59: #{tpu_custom_call.1} parent=5 // pred_region
        %s474 = ssub.s32 %s24, 2
        // Predicated region
        $region61: #{tpu_custom_call.1} parent=59 // pred_check
          %p475 = pneg %p151
        $region62: #{tpu_custom_call.1} parent=59 // pred_check_branch
          %477 = sbr.rel (%p475) target = $region64
        $region63: #{tpu_custom_call.1} parent=59 // pred_region
          %s478 = sand.u32 %s136, 1
          %s479 = scalar_lea.sflag [#allocation4], %s478
          %s480 = sand.u32 %s136, 1
          %s481 = smul.addr %s480, 4
          %s482 = scalar_lea.vmem [#allocation8], %s481
          %483 = dma.done %s479, 64
        $region64: #{tpu_custom_call.1} parent=59 // pred_fallthru
          _
        // Predicated region
        $region65: #{tpu_custom_call.1} parent=59 // pred_check
          %p484 = pneg %p179
        $region66: #{tpu_custom_call.1} parent=59 // pred_check_branch
          %486 = sbr.rel (%p484) target = $region68
        $region67: #{tpu_custom_call.1} parent=59 // pred_region
          %s487 = sand.u32 %s30, 1
          %s488 = scalar_lea.sflag [#allocation10], %s487
          %s489 = sand.u32 %s164, 1
          %s490 = smul.addr %s489, 4
          %s491 = scalar_lea.vmem [#allocation9], %s490
          %492 = dma.done %s488, 64
        $region68: #{tpu_custom_call.1} parent=59 // pred_fallthru
          _
        // Predicated region
        $region69: #{tpu_custom_call.1} parent=59 // pred_check
          %p493 = pneg %p207
        $region70: #{tpu_custom_call.1} parent=59 // pred_check_branch
          %495 = sbr.rel (%p493) target = $region72
        $region71: #{tpu_custom_call.1} parent=59 // pred_region
          %s496 = sand.u32 %s30, 1
          %s497 = scalar_lea.sflag [#allocation10], %s496
          %s498 = sand.u32 %s192, 1
          %s499 = smul.addr %s498, 4
          %s500 = scalar_lea.vmem [#allocation11], %s499
          %501 = dma.done %s497, 64
        $region72: #{tpu_custom_call.1} parent=59 // pred_fallthru
          _
      $region60: #{tpu_custom_call.1} parent=5 // pred_fallthru
        _
    $region6: #{tpu_custom_call.1} parent=1 // loop_footer
      %s28 = sadd.s32 1, %s24
    $region7: #{tpu_custom_call.1} parent=1 // loop_footer_branch
      %23 = sbr.rel target = $region3
    $region8: #{tpu_custom_call.1} parent=1 // loop_exit
      _
    %502 = vsyncpa [#allocation3], 1
    %s503 = scalar_lea.sflag [#allocation3], 1
    %504 = vsyncpa %s503, 1
    %505 = vsyncpa [#allocation6], 1
    %s506 = scalar_lea.sflag [#allocation6], 1
    %507 = vsyncpa %s506, 1
    %508 = vsyncpa [#allocation4], 1
    %s509 = scalar_lea.sflag [#allocation4], 1
    %510 = vsyncpa %s509, 1
    %511 = vsyncpa [#allocation10], 1
    %s512 = scalar_lea.sflag [#allocation10], 1
    %513 = vsyncpa %s512, 1

</llo_original>
